<compile_context>
chip_gen: v7x
topology: tpu7x:2x2x1
jax: 0.10.0
libtpu: 0.0.40
codegen_flags: <defaults>
</compile_context>

<pallas_src>
import functools

import jax
import jax.numpy as jnp
from jax import lax
from jax.experimental import pallas as pl
from jax.experimental.pallas import tpu as pltpu


def _round_up(n, m):
    return ((n + m - 1) // m) * m


def _cross_kernel(x_ref, w_ref, b_ref, o_ref, *, cn_layers, chunk_rows, unroll):
    # x_ref/o_ref: (tile_b, D) in the caller's dtype; w_ref/b_ref: (L, D) f32.
    w = w_ref[...]                       # f32, loaded once per grid step
    b = b_ref[...]                       # f32
    tile_b = x_ref.shape[0]
    n_chunks = tile_b // chunk_rows

    def body(c, carry):
        row0 = pl.multiple_of(c * chunk_rows, chunk_rows)
        x0 = x_ref[pl.ds(row0, chunk_rows), :].astype(jnp.float32)   # (CH, D)
        x = x0
        # cn_layers is a small static compile-time constant; unroll in Python.
        for i in range(cn_layers):
            wi = w[i, :][None, :]                                    # (1, D)
            bi = b[i, :][None, :]                                    # (1, D)
            xw = jnp.sum(x * wi, axis=-1, keepdims=True)             # (CH, 1)
            x = x0 * xw + bi + x
        o_ref[pl.ds(row0, chunk_rows), :] = x.astype(o_ref.dtype)
        return carry

    lax.fori_loop(0, n_chunks, body, 0, unroll=unroll)


# Conservative budget for the x/out double buffers: stays well under the
# default scoped VMEM limit on v5e/v6e (32 of 128 MiB) and v7x (32 of 64 MiB).
_VMEM_BUDGET_BYTES = 24 * 1024 * 1024

# Keep x0 and x around <= 16 vregs each inside a chunk (128*128 f32 elements).
_MAX_CHUNK_ELEMS = 128 * 128


def cross_network(x, w, b, *, tile_b=512, chunk_rows=128):
    """x: (B, D); w: (L, D); b: (L, D). Returns (B, D) in x.dtype.

    x may be float32 or bfloat16; compute is always f32 inside the kernel.
    B and D may be arbitrary (padded internally to tile / 128 multiples).
    """
    B, D = x.shape
    L = w.shape[0]
    out_dtype = x.dtype

    # --- shape normalization ------------------------------------------------
    D_pad = _round_up(max(D, 1), 128)          # lane-dense last dim

    # Cap chunk_rows so the per-chunk live set fits comfortably in vregs.
    chunk_rows = min(chunk_rows, max(8, (_MAX_CHUNK_ELEMS // D_pad) // 8 * 8))

    # Cap tile_b by a VMEM budget: 2 (in+out) x 2 (double buffer) x tile_b x
    # D_pad x itemsize must fit comfortably.
    bytes_per_row = 4 * D_pad * jnp.dtype(out_dtype).itemsize
    max_tile_b = max(8, (_VMEM_BUDGET_BYTES // bytes_per_row) // 8 * 8)

    tile_b = min(tile_b, max_tile_b, _round_up(B, 8))
    tile_b = max(tile_b, 8)
    chunk_rows = min(chunk_rows, tile_b)
    tile_b = (tile_b // chunk_rows) * chunk_rows   # tile_b % chunk_rows == 0

    B_pad = _round_up(B, tile_b)

    if (B_pad, D_pad) != (B, D):
        x = jnp.pad(x, ((0, B_pad - B), (0, D_pad - D)))
    if D_pad != D:
        w = jnp.pad(w, ((0, 0), (0, D_pad - D)))
        b = jnp.pad(b, ((0, 0), (0, D_pad - D)))

    # Cast params to f32 once in the wrapper (hoists the cast out of the
    # per-grid-step hot path; also covers bf16 parameter inputs).
    w32 = w.astype(jnp.float32)
    b32 = b.astype(jnp.float32)

    n_chunks = tile_b // chunk_rows
    kernel = functools.partial(
        _cross_kernel,
        cn_layers=L,
        chunk_rows=chunk_rows,
        unroll=(n_chunks <= 8),   # short fixed loop -> unroll for LLO visibility
    )

    out = pl.pallas_call(
        kernel,
        out_shape=jax.ShapeDtypeStruct((B_pad, D_pad), out_dtype),
        grid_spec=pltpu.PrefetchScalarGridSpec(
            num_scalar_prefetch=0,
            grid=(B_pad // tile_b,),
            in_specs=[
                pl.BlockSpec((tile_b, D_pad), lambda i: (i, 0)),   # x tile
                pl.BlockSpec((L, D_pad), lambda i: (0, 0)),        # all weights
                pl.BlockSpec((L, D_pad), lambda i: (0, 0)),        # all biases
            ],
            out_specs=pl.BlockSpec((tile_b, D_pad), lambda i: (i, 0)),
        ),
        compiler_params=pltpu.CompilerParams(
            dimension_semantics=("parallel",),
        ),
    )(x, w32, b32)

    if (B_pad, D_pad) != (B, D):
        out = out[:B, :D]
    return out


def cross_network_ref(x, w, b):
    """Plain-JAX reference mirroring the PyTorch forward exactly."""
    x0 = x
    out = x
    for i in range(w.shape[0]):
        xw = out @ w[i][:, None]          # (B, 1)
        out = x0 * xw + b[i] + out
    return out


if __name__ == "__main__":
    key = jax.random.PRNGKey(0)

    batch = 16
    input_dim = 128
    cn_layers = 3

    kx, kw = jax.random.split(key)
    x = jax.random.normal(kx, (batch, input_dim), dtype=jnp.float32)

    # Deterministic parameter init:
    #   w[i]: Linear(input_dim, 1, bias=False) weight, shape (input_dim,)
    #         (PyTorch default: uniform(-1/sqrt(input_dim), 1/sqrt(input_dim)))
    #   b[i]: zeros((input_dim,)) as in the module __init__
    bound = 1.0 / jnp.sqrt(jnp.float32(input_dim))
    w = jax.random.uniform(
        kw, (cn_layers, input_dim), dtype=jnp.float32, minval=-bound, maxval=bound
    )
    b = jnp.zeros((cn_layers, input_dim), dtype=jnp.float32)

    # --- f32 path, exact small shape from the module spec -------------------
    out = jax.block_until_ready(cross_network(x, w, b))
    ref = cross_network_ref(x, w, b)
    assert out.shape == (batch, input_dim)
    assert jnp.allclose(out, ref, atol=1e-4, rtol=1e-4), "f32 mismatch vs ref"

    # --- ragged batch / non-128-multiple feature dim -------------------------
    x2 = jax.random.normal(jax.random.PRNGKey(1), (1000, 96), dtype=jnp.float32)
    w2 = jax.random.uniform(
        jax.random.PRNGKey(2), (cn_layers, 96), dtype=jnp.float32,
        minval=-bound, maxval=bound)
    b2 = jnp.zeros((cn_layers, 96), dtype=jnp.float32)
    out2 = jax.block_until_ready(cross_network(x2, w2, b2))
    ref2 = cross_network_ref(x2, w2, b2)
    assert out2.shape == (1000, 96)
    assert jnp.allclose(out2, ref2, atol=1e-4, rtol=1e-4), "ragged mismatch"

    # --- bf16 I/O path (compute stays f32 in-kernel) -------------------------
    x3 = x.astype(jnp.bfloat16)
    out3 = jax.block_until_ready(cross_network(x3, w, b))
    ref3 = cross_network_ref(x3.astype(jnp.float32), w, b)
    assert out3.dtype == jnp.bfloat16
    assert jnp.allclose(out3.astype(jnp.float32), ref3, atol=5e-2, rtol=5e-2), \
        "bf16 mismatch vs ref"

    print("KERNEL_OK")
</pallas_src>

<mosaic_0001>
module attributes {stable_mosaic.version = 11 : i64} {
  func.func @_cross_kernel(%arg0: i32, %arg1: memref<16x128xf32, #tpu.memory_space<vmem>>, %arg2: memref<3x128xf32, #tpu.memory_space<vmem>>, %arg3: memref<3x128xf32, #tpu.memory_space<vmem>>, %arg4: memref<16x128xf32, #tpu.memory_space<vmem>>) attributes {dimension_semantics = [#tpu.dimension_semantics<parallel>], iteration_bounds = array<i64: 1>, scalar_prefetch = 0 : i64, scratch_operands = 0 : i64, tpu.core_type = #tpu.core_type<tc>, window_params = [{transform_indices = @transform_0, window_bounds = array<i64: 16, 128>}, {pipeline_mode = #tpu.pipeline_mode<synchronous>, transform_indices = @transform_1, window_bounds = array<i64: 3, 128>}, {pipeline_mode = #tpu.pipeline_mode<synchronous>, transform_indices = @transform_2, window_bounds = array<i64: 3, 128>}, {transform_indices = @transform_3, window_bounds = array<i64: 16, 128>}]} {
    %c0 = arith.constant 0 : index
    %c0_0 = arith.constant 0 : index
    %0 = vector.load %arg2[%c0, %c0_0] : memref<3x128xf32, #tpu.memory_space<vmem>>, vector<3x128xf32>
    %c0_1 = arith.constant 0 : index
    %c0_2 = arith.constant 0 : index
    %1 = vector.load %arg3[%c0_1, %c0_2] : memref<3x128xf32, #tpu.memory_space<vmem>>, vector<3x128xf32>
    %c0_i32 = arith.constant 0 : i32
    %c16_i32 = arith.constant 16 : i32
    %2 = arith.muli %c0_i32, %c16_i32 : i32
    %3 = tpu.assume_multiple %2, 16 : i32
    %4 = arith.index_cast %3 : i32 to index
    %c0_3 = arith.constant 0 : index
    %5 = vector.load %arg1[%4, %c0_3] : memref<16x128xf32, #tpu.memory_space<vmem>>, vector<16x128xf32>
    %6 = vector.extract_strided_slice %0 {offsets = [0, 0], sizes = [1, 128], strides = [1, 1]} : vector<3x128xf32> to vector<1x128xf32>
    %7 = vector.shape_cast %6 : vector<1x128xf32> to vector<128xf32>
    %8 = vector.shape_cast %7 : vector<128xf32> to vector<1x128xf32>
    %9 = vector.extract_strided_slice %1 {offsets = [0, 0], sizes = [1, 128], strides = [1, 1]} : vector<3x128xf32> to vector<1x128xf32>
    %10 = vector.shape_cast %9 : vector<1x128xf32> to vector<128xf32>
    %11 = vector.shape_cast %10 : vector<128xf32> to vector<1x128xf32>
    %12 = vector.broadcast %8 : vector<1x128xf32> to vector<16x128xf32>
    %13 = arith.mulf %5, %12 : vector<16x128xf32>
    %cst = arith.constant dense<0.000000e+00> : vector<16xf32>
    %14 = vector.multi_reduction <add>, %13, %cst [1] : vector<16x128xf32> to vector<16xf32>
    %15 = vector.shape_cast %14 : vector<16xf32> to vector<16x1xf32>
    %16 = vector.broadcast %15 : vector<16x1xf32> to vector<16x128xf32>
    %17 = arith.mulf %5, %16 : vector<16x128xf32>
    %18 = vector.broadcast %11 : vector<1x128xf32> to vector<16x128xf32>
    %19 = arith.addf %17, %18 : vector<16x128xf32>
    %20 = arith.addf %19, %5 : vector<16x128xf32>
    %21 = vector.extract_strided_slice %0 {offsets = [1, 0], sizes = [1, 128], strides = [1, 1]} : vector<3x128xf32> to vector<1x128xf32>
    %22 = vector.shape_cast %21 : vector<1x128xf32> to vector<128xf32>
    %23 = vector.shape_cast %22 : vector<128xf32> to vector<1x128xf32>
    %24 = vector.extract_strided_slice %1 {offsets = [1, 0], sizes = [1, 128], strides = [1, 1]} : vector<3x128xf32> to vector<1x128xf32>
    %25 = vector.shape_cast %24 : vector<1x128xf32> to vector<128xf32>
    %26 = vector.shape_cast %25 : vector<128xf32> to vector<1x128xf32>
    %27 = vector.broadcast %23 : vector<1x128xf32> to vector<16x128xf32>
    %28 = arith.mulf %20, %27 : vector<16x128xf32>
    %cst_4 = arith.constant dense<0.000000e+00> : vector<16xf32>
    %29 = vector.multi_reduction <add>, %28, %cst_4 [1] : vector<16x128xf32> to vector<16xf32>
    %30 = vector.shape_cast %29 : vector<16xf32> to vector<16x1xf32>
    %31 = vector.broadcast %30 : vector<16x1xf32> to vector<16x128xf32>
    %32 = arith.mulf %5, %31 : vector<16x128xf32>
    %33 = vector.broadcast %26 : vector<1x128xf32> to vector<16x128xf32>
    %34 = arith.addf %32, %33 : vector<16x128xf32>
    %35 = arith.addf %34, %20 : vector<16x128xf32>
    %36 = vector.extract_strided_slice %0 {offsets = [2, 0], sizes = [1, 128], strides = [1, 1]} : vector<3x128xf32> to vector<1x128xf32>
    %37 = vector.shape_cast %36 : vector<1x128xf32> to vector<128xf32>
    %38 = vector.shape_cast %37 : vector<128xf32> to vector<1x128xf32>
    %39 = vector.extract_strided_slice %1 {offsets = [2, 0], sizes = [1, 128], strides = [1, 1]} : vector<3x128xf32> to vector<1x128xf32>
    %40 = vector.shape_cast %39 : vector<1x128xf32> to vector<128xf32>
    %41 = vector.shape_cast %40 : vector<128xf32> to vector<1x128xf32>
    %42 = vector.broadcast %38 : vector<1x128xf32> to vector<16x128xf32>
    %43 = arith.mulf %35, %42 : vector<16x128xf32>
    %cst_5 = arith.constant dense<0.000000e+00> : vector<16xf32>
    %44 = vector.multi_reduction <add>, %43, %cst_5 [1] : vector<16x128xf32> to vector<16xf32>
    %45 = vector.shape_cast %44 : vector<16xf32> to vector<16x1xf32>
    %46 = vector.broadcast %45 : vector<16x1xf32> to vector<16x128xf32>
    %47 = arith.mulf %5, %46 : vector<16x128xf32>
    %48 = vector.broadcast %41 : vector<1x128xf32> to vector<16x128xf32>
    %49 = arith.addf %47, %48 : vector<16x128xf32>
    %50 = arith.addf %49, %35 : vector<16x128xf32>
    %51 = arith.index_cast %3 : i32 to index
    %c0_6 = arith.constant 0 : index
    %52 = vector.load %arg4[%51, %c0_6] : memref<16x128xf32, #tpu.memory_space<vmem>>, vector<16x128xf32>
    tpu.vector_store %arg4[%51, %c0_6], %50 {strides = array<i32>} : memref<16x128xf32, #tpu.memory_space<vmem>>, vector<16x128xf32>,
    %c1_i32 = arith.constant 1 : i32
    return
  }
  func.func @transform_0(%arg0: i32) -> (i32, i32) {
    %c0_i32 = arith.constant 0 : i32
    %c0_i32_0 = arith.constant 0 : i32
    return %arg0, %c0_i32 : i32, i32
  }
  func.func @transform_1(%arg0: i32) -> (i32, i32) {
    %c0_i32 = arith.constant 0 : i32
    %c0_i32_0 = arith.constant 0 : i32
    %c0_i32_1 = arith.constant 0 : i32
    return %c0_i32, %c0_i32_0 : i32, i32
  }
  func.func @transform_2(%arg0: i32) -> (i32, i32) {
    %c0_i32 = arith.constant 0 : i32
    %c0_i32_0 = arith.constant 0 : i32
    %c0_i32_1 = arith.constant 0 : i32
    return %c0_i32, %c0_i32_0 : i32, i32
  }
  func.func @transform_3(%arg0: i32) -> (i32, i32) {
    %c0_i32 = arith.constant 0 : i32
    %c0_i32_0 = arith.constant 0 : i32
    return %arg0, %c0_i32 : i32, i32
  }
}

</mosaic_0001>

<llo_original>
// kernel: tpu_custom_call.1
$region0: #{tpu_custom_call.1}
  #allocation0 [shape = 'u32[]', space=smem, size = 0x4, offset = 0x4, fixed_abs, tag = 'smem constant byte address 0x4 - core index']
  #allocation1 [shape = 'u32[144,128]{1,0:T(1,128)}', space=vmem, size = 0x12000, scoped, tag = 'internal scratch']
  %s0 = inlined_call_operand.hbm [shape: f32[16,128], index: 0, kind: input, shape index: {}]
  %s1 = inlined_call_operand.hbm [shape: f32[3,128], index: 1, kind: input, shape index: {}]
  %s2 = inlined_call_operand.vmem [shape: f32[3,128], index: 2, kind: input, shape index: {}]
  %s3 = inlined_call_operand.hbm [shape: f32[16,128], index: 3, kind: output, shape index: {}]
  %s4 = sld [smem:[#allocation0]]
  $region30: #{tpu_custom_call.1} parent=0
    _
  %s6 = ssub.s32 1, %s4
  %s7 = scalar_select 0, %s6, %s4
  $region1: #{tpu_custom_call.1} parent=0
    #allocation2 [shape = 'u8[8192]{0}', space=vmem, size = 0x2000, scoped, tag = 'input window, operand 0, single buffered']
    #allocation3 [shape = 's32[1]{0}', space=sflag, size = 0x4, scoped, tag = 'scoped memory for tpu_custom_call.1']
    #allocation4 [shape = 's32[1]{0}', space=sflag, size = 0x4, scoped, tag = 'scoped memory for tpu_custom_call.1']
    #allocation5 [shape = 'u8[2048]{0}', space=vmem, size = 0x800, scoped, tag = 'input window, operand 1, single buffered']
    #allocation6 [shape = 's32[1]{0}', space=sflag, size = 0x4, scoped, tag = 'scoped memory for tpu_custom_call.1']
    #allocation7 [shape = 'u8[8192]{0}', space=vmem, size = 0x2000, scoped, tag = 'output window, operand 0, single buffered']
    %8 = vsyncpa [#allocation3], 0
    %9 = vsyncpa [#allocation6], 0
    %10 = vsyncpa [#allocation4], 0
    // Predicated region
    $region2: #{tpu_custom_call.1} parent=1 // pred_check
      _
    $region3: #{tpu_custom_call.1} parent=1 // pred_check_branch
      %12 = sbr.rel (0) target = $region5
    $region4: #{tpu_custom_call.1} parent=1 // pred_region
      %s14 = ssub.s32 256, 256
      %15 = vsyncadd [#allocation3], %s14
      %s16 = sshll.u32 [#allocation2], 4
      %s17 = int_to_ptr.vmem [resolvable:$true] %s16
      %22 = dma.hbm_to_vmem [thread:$0]  %s0, 256, %s17, [#allocation3], 128, 128, 8
    $region5: #{tpu_custom_call.1} parent=1 // pred_fallthru
      _
    // Predicated region
    $region6: #{tpu_custom_call.1} parent=1 // pred_check
      _
    $region7: #{tpu_custom_call.1} parent=1 // pred_check_branch
      %24 = sbr.rel (0) target = $region9
    $region8: #{tpu_custom_call.1} parent=1 // pred_region
      %s26 = ssub.s32 64, 64
      %27 = vsyncadd [#allocation6], %s26
      %s29 = sshll.u32 [#allocation5], 4
      %s30 = int_to_ptr.vmem [resolvable:$true] %s29
      %32 = dma.hbm_to_vmem [thread:$0]  %s1, 64, %s30, [#allocation6]
    $region9: #{tpu_custom_call.1} parent=1 // pred_fallthru
      _
    // Predicated region
    $region10: #{tpu_custom_call.1} parent=1 // pred_check
      _
    $region11: #{tpu_custom_call.1} parent=1 // pred_check_branch
      %34 = sbr.rel (0) target = $region13
    $region12: #{tpu_custom_call.1} parent=1 // pred_region
      _
    $region13: #{tpu_custom_call.1} parent=1 // pred_fallthru
      _
    // Predicated region
    $region14: #{tpu_custom_call.1} parent=1 // pred_check
      _
    $region15: #{tpu_custom_call.1} parent=1 // pred_check_branch
      %36 = sbr.rel (0) target = $region17
    $region16: #{tpu_custom_call.1} parent=1 // pred_region
      %37 = dma.done [#allocation3], 256
    $region17: #{tpu_custom_call.1} parent=1 // pred_fallthru
      _
    // Predicated region
    $region18: #{tpu_custom_call.1} parent=1 // pred_check
      _
    $region19: #{tpu_custom_call.1} parent=1 // pred_check_branch
      %39 = sbr.rel (0) target = $region21
    $region20: #{tpu_custom_call.1} parent=1 // pred_region
      %40 = dma.done [#allocation6], 64
    $region21: #{tpu_custom_call.1} parent=1 // pred_fallthru
      _
    %v41 = vld [vmem:[#allocation5] sm:$0x7]
    %v42 = vld [vmem:[%s2] sm:$0x7]
    %v43 = vld [vmem:[#allocation2] sm:$0xff]
    %v44 = vld [vmem:[#allocation2 + $0x8] sm:$0xff]
    %v45 = vlaneseq
    %v46 = vshrl.u32 %v45, 7
    %v47 = vsub.s32 0, %v46
    %v48 = vrot.slane %v41, %v47
    %v49 = vmul.f32 %v43, %v48
    %v50 = vmul.f32 %v44, %v48
    %51 = vadd.xlane.f32.xlu0 %v49
    %v52 = vpop.xlane.xlu0 %51
    %53 = vadd.xlane.f32.xlu0 %v50
    %v54 = vpop.xlane.xlu0 %53
    %v55 = vmul.f32 %v43, %v52
    %v56 = vmul.f32 %v44, %v54
    %v57 = vlaneseq
    %v58 = vshrl.u32 %v57, 7
    %v59 = vsub.s32 0, %v58
    %v60 = vrot.slane %v42, %v59
    %v61 = vadd.f32 %v55, %v60
    %v62 = vadd.f32 %v56, %v60
    %v63 = vadd.f32 %v61, %v43
    %v64 = vadd.f32 %v62, %v44
    %v65 = vlaneseq
    %v66 = vshrl.u32 %v65, 7
    %v67 = vsub.s32 1, %v66
    %v68 = vrot.slane %v41, %v67
    %v69 = vmul.f32 %v63, %v68
    %v70 = vmul.f32 %v64, %v68
    %71 = vadd.xlane.f32.xlu0 %v69
    %v72 = vpop.xlane.xlu0 %71
    %73 = vadd.xlane.f32.xlu0 %v70
    %v74 = vpop.xlane.xlu0 %73
    %v75 = vmul.f32 %v43, %v72
    %v76 = vmul.f32 %v44, %v74
    %v77 = vlaneseq
    %v78 = vshrl.u32 %v77, 7
    %v79 = vsub.s32 1, %v78
    %v80 = vrot.slane %v42, %v79
    %v81 = vadd.f32 %v75, %v80
    %v82 = vadd.f32 %v76, %v80
    %v83 = vadd.f32 %v81, %v63
    %v84 = vadd.f32 %v82, %v64
    %v85 = vlaneseq
    %v86 = vshrl.u32 %v85, 7
    %v87 = vsub.s32 2, %v86
    %v88 = vrot.slane %v41, %v87
    %v89 = vmul.f32 %v83, %v88
    %v90 = vmul.f32 %v84, %v88
    %91 = vadd.xlane.f32.xlu0 %v89
    %v92 = vpop.xlane.xlu0 %91
    %93 = vadd.xlane.f32.xlu0 %v90
    %v94 = vpop.xlane.xlu0 %93
    %v95 = vmul.f32 %v43, %v92
    %v96 = vmul.f32 %v44, %v94
    %v97 = vlaneseq
    %v98 = vshrl.u32 %v97, 7
    %v99 = vsub.s32 2, %v98
    %v100 = vrot.slane %v42, %v99
    %v101 = vadd.f32 %v95, %v100
    %v102 = vadd.f32 %v96, %v100
    %v103 = vadd.f32 %v101, %v83
    %v104 = vadd.f32 %v102, %v84
    %105 = vst [vmem:[#allocation7] sm:$0xff] %v103
    %106 = vst [vmem:[#allocation7 + $0x8] sm:$0xff] %v104
    // Predicated region
    $region22: #{tpu_custom_call.1} parent=1 // pred_check
      _
    $region23: #{tpu_custom_call.1} parent=1 // pred_check_branch
      %108 = sbr.rel (0) target = $region25
    $region24: #{tpu_custom_call.1} parent=1 // pred_region
      %s110 = ssub.s32 256, 256
      %111 = vsyncadd [#allocation4], %s110
      %s112 = sshll.u32 [#allocation7], 4
      %s113 = int_to_ptr.vmem [resolvable:$true] %s112
      %118 = dma.vmem_to_hbm [thread:$0]  %s113, 256, %s3, [#allocation4], 128, 128, 8
    $region25: #{tpu_custom_call.1} parent=1 // pred_fallthru
      _
    // Predicated region
    $region26: #{tpu_custom_call.1} parent=1 // pred_check
      _
    $region27: #{tpu_custom_call.1} parent=1 // pred_check_branch
      %120 = sbr.rel (0) target = $region29
    $region28: #{tpu_custom_call.1} parent=1 // pred_region
      %121 = dma.done [#allocation4], 256
    $region29: #{tpu_custom_call.1} parent=1 // pred_fallthru
      _
    %122 = vsyncpa [#allocation3], 1
    %123 = vsyncpa [#allocation6], 1
    %124 = vsyncpa [#allocation4], 1

</llo_original>
